<compile_context>
chip_gen: v7x
topology: tpu7x:2x2x1
jax: 0.10.0
libtpu: 0.0.40
codegen_flags: <defaults>
</compile_context>

<pallas_src>
import functools
import math

import jax
import jax.numpy as jnp
from jax import lax
from jax.experimental import pallas as pl
from jax.experimental.pallas import tpu as pltpu


def _round_up(x, m):
    return (x + m - 1) // m * m


# ----------------------------- Pallas kernel --------------------------------

def _tcn_fused_kernel(x_ref, w_ref, b_ref, lwt_ref, lb_ref, o_ref, *,
                      layers, B, L, BLp):
    """Entire TCN forward on one (C, BLp) activation slab kept in VMEM/vregs.

    layers: tuple of (K, dil, has_ds, c_out, r1_off, r1_rows, r1_cols,
                      r2_off, r2_rows, r2_cols) with static row offsets into
    the packed weight/bias slabs.
    """
    # Hoisted causal-shift machinery: one iota/mod and one mask per distinct
    # static shift for the whole network.
    shifts = sorted({(K - 1 - k) * dil
                     for (K, dil, *_r) in layers for k in range(K)} - {0})
    pos = lax.broadcasted_iota(jnp.int32, (1, BLp), 1) % L
    masks = {s: pos >= s for s in shifts if s < L}

    def tap(h, s):
        # h delayed by s samples within each length-L batch segment.
        if s == 0:
            return h
        if s >= L:
            return jnp.zeros_like(h)
        # roll runs on the XLU; the mask zeroes the first s positions of every
        # batch segment so no data leaks across batch boundaries (or from the
        # wrap-around / lane padding).
        return jnp.where(masks[s], pltpu.roll(h, s, axis=1), 0.0)

    def im2col(h, K, dil):
        cols = [tap(h, (K - 1 - k) * dil) for k in range(K)]
        return cols[0] if K == 1 else jnp.concatenate(cols, axis=0)

    h = x_ref[...]                              # (C_in0, BLp) f32, stays on-chip

    for (K, dil, has_ds, c_out, r1o, r1r, r1c, r2o, r2r, r2c) in layers:
        # conv1 (+ folded BN, + folded 1x1 downsample rows when has_ds) as one
        # im2col MXU matmul; chomp is implicit, Dropout = identity.
        w1 = w_ref[r1o:r1o + r1r, 0:r1c]                      # bf16
        b1 = b_ref[r1o:r1o + r1r, :]                          # f32
        pre1 = jnp.dot(w1, im2col(h, K, dil).astype(jnp.bfloat16),
                       preferred_element_type=jnp.float32) + b1
        if has_ds:
            h1 = jnp.maximum(pre1[:c_out], 0.0)               # conv1 -> relu
            res = pre1[c_out:]                                # 1x1 downsample
        else:
            h1 = jnp.maximum(pre1, 0.0)
            res = h                                           # identity residual
        # conv2 (+ folded BN) -> relu
        w2 = w_ref[r2o:r2o + r2r, 0:r2c]
        b2 = b_ref[r2o:r2o + r2r, :]
        out = jnp.maximum(
            jnp.dot(w2, im2col(h1, K, dil).astype(jnp.bfloat16),
                    preferred_element_type=jnp.float32) + b2, 0.0)
        h = jnp.maximum(out + res, 0.0)

    # Linear head on the last time step of each batch element, extracted with a
    # small selection matmul (no transposes / strided gathers).
    bi = lax.broadcasted_iota(jnp.int32, (B, BLp), 0)
    ti = lax.broadcasted_iota(jnp.int32, (B, BLp), 1)
    sel = (ti == bi * L + (L - 1)).astype(jnp.float32)        # (B, BLp) one-hot
    last = lax.dot_general(sel, h, (((1,), (1,)), ((), ())),
                           preferred_element_type=jnp.float32)  # (B, C_last)
    o = jnp.dot(last.astype(jnp.bfloat16), lwt_ref[...],
                preferred_element_type=jnp.float32) + lb_ref[...]
    o_ref[...] = o.astype(o_ref.dtype)


# ------------------------------- wrapper -------------------------------------

def _full2d(shape):
    return pl.BlockSpec(tuple(int(d) for d in shape), lambda i: (0, 0))


def tcn_forward(x, params):
    """TCN.forward: y = TemporalConvNet(x); o = Linear(y[:, :, -1])."""
    B, C_in, L = x.shape
    BL = B * L
    BLp = _round_up(BL, 128)                      # lane-dense activation slab

    # layout plumbing: (B, C, L) -> (C, B*L) so batch lives on the lane axis
    x2d = jnp.transpose(x, (1, 0, 2)).reshape(C_in, BL)
    if BLp != BL:
        x2d = jnp.pad(x2d, ((0, 0), (0, BLp - BL)))

    O = params["output_size"]
    Opad = params["lin_b"].shape[1]

    inputs = [x2d, params["w_slab"], params["b_slab"],
              params["lin_wt"], params["lin_b"]]

    kernel = functools.partial(_tcn_fused_kernel,
                               layers=params["layers_meta"], B=B, L=L, BLp=BLp)
    out = pl.pallas_call(
        kernel,
        out_shape=jax.ShapeDtypeStruct((B, Opad), jnp.float32),
        grid=(1,),
        in_specs=[_full2d(a.shape) for a in inputs],
        out_specs=_full2d((B, Opad)),
        compiler_params=pltpu.CompilerParams(
            dimension_semantics=("arbitrary",)),
    )(*inputs)
    return out[:, :O]


# --------------------------- parameter init ----------------------------------

def init_tcn_params(key, input_size, output_size, num_channels, kernel_size):
    """Builds fused-kernel params (BN folded, im2col layout, downsample folded
    into conv1, everything packed into two slabs, bf16 MXU weights) plus raw
    f32 parameters for the pure-JAX reference."""
    eps = 1e-5
    metas, blocks_ref = [], []
    w_blocks, b_blocks = [], []

    for i, c_out in enumerate(num_channels):
        dil = 2 ** i
        c_in = input_size if i == 0 else num_channels[i - 1]
        K = kernel_size
        key, k1, k2, kb1, kb2, kd, kbd = jax.random.split(key, 7)
        # conv weights ~ N(0, 0.01) (TemporalBlock.init_weights); weight_norm
        # g initialized to ||v|| -> effective weight equals v.
        w1 = 0.01 * jax.random.normal(k1, (c_out, c_in, K), jnp.float32)
        w2 = 0.01 * jax.random.normal(k2, (c_out, c_out, K), jnp.float32)
        bnd1 = 1.0 / math.sqrt(c_in * K)
        bnd2 = 1.0 / math.sqrt(c_out * K)
        b1 = jax.random.uniform(kb1, (c_out,), jnp.float32, -bnd1, bnd1)
        b2 = jax.random.uniform(kb2, (c_out,), jnp.float32, -bnd2, bnd2)
        has_ds = (c_in != c_out)
        if has_ds:
            wd = 0.01 * jax.random.normal(kd, (c_out, c_in), jnp.float32)
            bndd = 1.0 / math.sqrt(c_in)
            bd = jax.random.uniform(kbd, (c_out,), jnp.float32, -bndd, bndd)
        else:
            wd, bd = None, None

        # BatchNorm1d eval (gamma=1, beta=0, mean=0, var=1) folded into conv.
        scale = jnp.full((c_out,), 1.0 / math.sqrt(1.0 + eps), jnp.float32)
        shift = jnp.zeros((c_out,), jnp.float32)
        w1_eff = w1 * scale[:, None, None]
        w2_eff = w2 * scale[:, None, None]
        b1_eff = (b1 * scale + shift).reshape(c_out, 1)
        b2_eff = (b2 * scale + shift).reshape(c_out, 1)

        # im2col layout (C_out, K*C_in): column block k holds tap-k weights
        # (tap k sees the input delayed by (K-1-k)*dil).
        w1_im = jnp.transpose(w1_eff, (0, 2, 1)).reshape(c_out, K * c_in)
        w2_im = jnp.transpose(w2_eff, (0, 2, 1)).reshape(c_out, K * c_out)

        if has_ds:
            # Fold the 1x1 downsample into conv1's matmul: extra output rows
            # whose only nonzero columns sit in the zero-shift tap block (K-1).
            wd_rows = jnp.zeros((c_out, K * c_in), jnp.float32)
            wd_rows = wd_rows.at[:, (K - 1) * c_in:K * c_in].set(wd)
            w1_blk = jnp.concatenate([w1_im, wd_rows], axis=0)
            b1_blk = jnp.concatenate([b1_eff, bd.reshape(c_out, 1)], axis=0)
        else:
            w1_blk, b1_blk = w1_im, b1_eff

        w_blocks += [w1_blk, w2_im]
        b_blocks += [b1_blk, b2_eff]
        metas.append(dict(K=K, dil=dil, has_ds=has_ds, c_out=c_out))
        blocks_ref.append(dict(K=K, dil=dil, has_ds=has_ds, w1=w1, b1=b1,
                               w2=w2, b2=b2, scale=scale, shift=shift,
                               wd=wd, bd=bd))

    # Pack every conv weight/bias into one lane-aligned slab each (one DMA
    # instead of 4-6 tiny ones per layer); block row offsets are 16-aligned so
    # the in-kernel bf16 row slices stay tile-aligned.
    wmax = _round_up(max(blk.shape[1] for blk in w_blocks), 128)
    offsets, row = [], 0
    for blk in w_blocks:
        offsets.append(row)
        row = _round_up(row + blk.shape[0], 16)
    total_rows = _round_up(row, 16)
    w_slab = jnp.zeros((total_rows, wmax), jnp.float32)
    b_slab = jnp.zeros((total_rows, 1), jnp.float32)
    for off, wb, bb in zip(offsets, w_blocks, b_blocks):
        w_slab = w_slab.at[off:off + wb.shape[0], :wb.shape[1]].set(wb)
        b_slab = b_slab.at[off:off + bb.shape[0], :].set(bb)
    w_slab = w_slab.astype(jnp.bfloat16)        # MXU operand dtype

    layers_meta = []
    for i, m in enumerate(metas):
        w1b, w2b = w_blocks[2 * i], w_blocks[2 * i + 1]
        layers_meta.append((m["K"], m["dil"], m["has_ds"], m["c_out"],
                            offsets[2 * i], w1b.shape[0], w1b.shape[1],
                            offsets[2 * i + 1], w2b.shape[0], w2b.shape[1]))

    # Linear head: pre-transposed, lane-padded to a 128 multiple (dense store).
    key, kw, kb = jax.random.split(key, 3)
    c_last = num_channels[-1]
    bnd = 1.0 / math.sqrt(c_last)
    lin_w = jax.random.uniform(kw, (output_size, c_last), jnp.float32, -bnd, bnd)
    lin_b = jax.random.uniform(kb, (output_size,), jnp.float32, -bnd, bnd)
    Opad = _round_up(output_size, 128)
    lin_wt_pad = (jnp.zeros((c_last, Opad), jnp.float32)
                  .at[:, :output_size].set(lin_w.T).astype(jnp.bfloat16))
    lin_b_pad = (jnp.zeros((1, Opad), jnp.float32)
                 .at[:, :output_size].set(lin_b.reshape(1, -1)))

    params = dict(layers_meta=tuple(layers_meta), w_slab=w_slab, b_slab=b_slab,
                  lin_wt=lin_wt_pad, lin_b=lin_b_pad, output_size=output_size)
    ref = dict(blocks=blocks_ref, lin_w=lin_w, lin_b=lin_b)
    return params, ref


# --------------------------- pure-JAX reference -------------------------------

def ref_tcn_forward(x, ref_params):
    dn = ("NCW", "OIW", "NCW")
    y = x
    for blk in ref_params["blocks"]:
        K, dil = blk["K"], blk["dil"]
        pad = (K - 1) * dil
        s = blk["scale"][None, :, None]
        t = blk["shift"][None, :, None]
        h = lax.conv_general_dilated(y, blk["w1"], (1,), [(pad, 0)],
                                     rhs_dilation=(dil,), dimension_numbers=dn)
        h = jax.nn.relu((h + blk["b1"][None, :, None]) * s + t)
        h2 = lax.conv_general_dilated(h, blk["w2"], (1,), [(pad, 0)],
                                      rhs_dilation=(dil,), dimension_numbers=dn)
        out = jax.nn.relu((h2 + blk["b2"][None, :, None]) * s + t)
        if blk["has_ds"]:
            res = jnp.einsum("oc,bcl->bol", blk["wd"], y) + blk["bd"][None, :, None]
        else:
            res = y
        y = jax.nn.relu(out + res)
    return y[:, :, -1] @ ref_params["lin_w"].T + ref_params["lin_b"]


# ---------------------------------- main --------------------------------------

if __name__ == "__main__":
    B, C_in, L = 2, 4, 16
    num_channels = [32, 32]
    output_size = 8
    kernel_size = 2

    key = jax.random.PRNGKey(0)
    kx, kp = jax.random.split(key)
    x = jax.random.normal(kx, (B, C_in, L), jnp.float32)
    params, ref_params = init_tcn_params(kp, C_in, output_size,
                                         num_channels, kernel_size)

    o = tcn_forward(x, params)
    o = jax.block_until_ready(o)
    assert o.shape == (B, output_size)

    # bf16 MXU operands (f32 accumulation) vs f32 reference -> looser tolerance.
    o_ref = ref_tcn_forward(x, ref_params)
    assert jnp.allclose(o, o_ref, atol=3e-2, rtol=3e-2), (o, o_ref)

    print("KERNEL_OK")
</pallas_src>

<mosaic_0001>
module attributes {stable_mosaic.version = 11 : i64} {
  func.func @_tcn_fused_kernel(%arg0: i32, %arg1: memref<4x128xf32, #tpu.memory_space<vmem>>, %arg2: memref<160x128xbf16, #tpu.memory_space<vmem>>, %arg3: memref<160x1xf32, #tpu.memory_space<vmem>>, %arg4: memref<32x128xbf16, #tpu.memory_space<vmem>>, %arg5: memref<1x128xf32, #tpu.memory_space<vmem>>, %arg6: memref<2x128xf32, #tpu.memory_space<vmem>>) attributes {dimension_semantics = [#tpu.dimension_semantics<arbitrary>], iteration_bounds = array<i64: 1>, scalar_prefetch = 0 : i64, scratch_operands = 0 : i64, tpu.core_type = #tpu.core_type<tc>, window_params = [{pipeline_mode = #tpu.pipeline_mode<synchronous>, transform_indices = @transform_0, window_bounds = array<i64: 4, 128>}, {pipeline_mode = #tpu.pipeline_mode<synchronous>, transform_indices = @transform_1, window_bounds = array<i64: 160, 128>}, {pipeline_mode = #tpu.pipeline_mode<synchronous>, transform_indices = @transform_2, window_bounds = array<i64: 160, 1>}, {pipeline_mode = #tpu.pipeline_mode<synchronous>, transform_indices = @transform_3, window_bounds = array<i64: 32, 128>}, {pipeline_mode = #tpu.pipeline_mode<synchronous>, transform_indices = @transform_4, window_bounds = array<i64: 1, 128>}, {pipeline_mode = #tpu.pipeline_mode<synchronous>, transform_indices = @transform_5, window_bounds = array<i64: 2, 128>}]} {
    %0 = tpu.iota {dimensions = array<i32: 1>} : vector<1x128xi32>
    %c16_i32 = arith.constant 16 : i32
    %c0_i32 = arith.constant 0 : i32
    %1 = arith.cmpi eq, %c16_i32, %c0_i32 : i32
    %c1_i32 = arith.constant 1 : i32
    %2 = arith.select %1, %c1_i32, %c16_i32 : i32
    %3 = vector.broadcast %2 : i32 to vector<1x128xi32>
    %4 = arith.remsi %0, %3 : vector<1x128xi32>
    %c0_i32_0 = arith.constant 0 : i32
    %5 = vector.broadcast %c0_i32_0 : i32 to vector<1x128xi32>
    %6 = arith.cmpi ne, %4, %5 : vector<1x128xi32>
    %c0_i32_1 = arith.constant 0 : i32
    %7 = vector.broadcast %c0_i32_1 : i32 to vector<1x128xi32>
    %8 = arith.cmpi slt, %4, %7 : vector<1x128xi32>
    %c0_i32_2 = arith.constant 0 : i32
    %9 = arith.cmpi slt, %2, %c0_i32_2 : i32
    %10 = vector.broadcast %9 : i1 to vector<1x128xi1>
    %11 = vector.broadcast %10 : vector<1x128xi1> to vector<1x128xi1>
    %12 = arith.xori %8, %11 : vector<1x128xi1>
    %13 = arith.andi %12, %6 : vector<1x128xi1>
    %14 = vector.broadcast %2 : i32 to vector<1x128xi32>
    %15 = arith.addi %4, %14 : vector<1x128xi32>
    %16 = arith.select %13, %15, %4 : vector<1x128xi1>, vector<1x128xi32>
    %c1_i32_3 = arith.constant 1 : i32
    %17 = vector.broadcast %c1_i32_3 : i32 to vector<1x128xi32>
    %18 = arith.cmpi sge, %16, %17 : vector<1x128xi32>
    %c2_i32 = arith.constant 2 : i32
    %19 = vector.broadcast %c2_i32 : i32 to vector<1x128xi32>
    %20 = arith.cmpi sge, %16, %19 : vector<1x128xi32>
    %c0 = arith.constant 0 : index
    %c0_4 = arith.constant 0 : index
    %21 = vector.load %arg1[%c0, %c0_4] : memref<4x128xf32, #tpu.memory_space<vmem>>, vector<4x128xf32>
    %c0_5 = arith.constant 0 : index
    %c0_6 = arith.constant 0 : index
    %22 = vector.load %arg2[%c0_5, %c0_6] : memref<160x128xbf16, #tpu.memory_space<vmem>>, vector<64x8xbf16>
    %c0_7 = arith.constant 0 : index
    %c0_8 = arith.constant 0 : index
    %23 = vector.load %arg3[%c0_7, %c0_8] : memref<160x1xf32, #tpu.memory_space<vmem>>, vector<64x1xf32>
    %c1_i32_9 = arith.constant 1 : i32
    %24 = tpu.dynamic_rotate %21 by %c1_i32_9 dim 1 : vector<4x128xf32>, i32 -> vector<4x128xf32>
    %cst = arith.constant 0.000000e+00 : f32
    %25 = vector.shape_cast %18 : vector<1x128xi1> to vector<1x128xi1>
    %26 = vector.broadcast %25 : vector<1x128xi1> to vector<4x128xi1>
    %27 = vector.broadcast %cst : f32 to vector<4x128xf32>
    %28 = arith.select %26, %24, %27 : vector<4x128xi1>, vector<4x128xf32>
    %29 = tpu.concatenate %28, %21 in 0 : vector<4x128xf32>, vector<4x128xf32> -> vector<8x128xf32>
    %30 = arith.truncf %29 : vector<8x128xf32> to vector<8x128xbf16>
    %cst_10 = arith.constant dense<0.000000e+00> : vector<64x128xf32>
    %31 = tpu.matmul %22, %30, %cst_10 {dimension_numbers = #tpu.dot_dimension_numbers<[1], [0], [0], [1], [0, 0, 1, 1], [], []>} : vector<64x8xbf16>, vector<8x128xbf16>, vector<64x128xf32> -> vector<64x128xf32>
    %32 = vector.broadcast %23 : vector<64x1xf32> to vector<64x128xf32>
    %33 = arith.addf %31, %32 : vector<64x128xf32>
    %34 = vector.extract_strided_slice %33 {offsets = [0, 0], sizes = [32, 128], strides = [1, 1]} : vector<64x128xf32> to vector<32x128xf32>
    %cst_11 = arith.constant 0.000000e+00 : f32
    %35 = vector.broadcast %cst_11 : f32 to vector<32x128xf32>
    %36 = arith.maximumf %34, %35 : vector<32x128xf32>
    %37 = vector.extract_strided_slice %33 {offsets = [32, 0], sizes = [32, 128], strides = [1, 1]} : vector<64x128xf32> to vector<32x128xf32>
    %c64 = arith.constant 64 : index
    %c0_12 = arith.constant 0 : index
    %38 = vector.load %arg2[%c64, %c0_12] : memref<160x128xbf16, #tpu.memory_space<vmem>>, vector<32x64xbf16>
    %c64_13 = arith.constant 64 : index
    %c0_14 = arith.constant 0 : index
    %39 = vector.load %arg3[%c64_13, %c0_14] : memref<160x1xf32, #tpu.memory_space<vmem>>, vector<32x1xf32>
    %c1_i32_15 = arith.constant 1 : i32
    %40 = tpu.dynamic_rotate %36 by %c1_i32_15 dim 1 : vector<32x128xf32>, i32 -> vector<32x128xf32>
    %cst_16 = arith.constant 0.000000e+00 : f32
    %41 = vector.shape_cast %18 : vector<1x128xi1> to vector<1x128xi1>
    %42 = vector.broadcast %41 : vector<1x128xi1> to vector<32x128xi1>
    %43 = vector.broadcast %cst_16 : f32 to vector<32x128xf32>
    %44 = arith.select %42, %40, %43 : vector<32x128xi1>, vector<32x128xf32>
    %45 = tpu.concatenate %44, %36 in 0 : vector<32x128xf32>, vector<32x128xf32> -> vector<64x128xf32>
    %46 = arith.truncf %45 : vector<64x128xf32> to vector<64x128xbf16>
    %cst_17 = arith.constant dense<0.000000e+00> : vector<32x128xf32>
    %47 = tpu.matmul %38, %46, %cst_17 {dimension_numbers = #tpu.dot_dimension_numbers<[1], [0], [0], [1], [0, 0, 1, 1], [], []>} : vector<32x64xbf16>, vector<64x128xbf16>, vector<32x128xf32> -> vector<32x128xf32>
    %48 = vector.broadcast %39 : vector<32x1xf32> to vector<32x128xf32>
    %49 = arith.addf %47, %48 : vector<32x128xf32>
    %cst_18 = arith.constant 0.000000e+00 : f32
    %50 = vector.broadcast %cst_18 : f32 to vector<32x128xf32>
    %51 = arith.maximumf %49, %50 : vector<32x128xf32>
    %52 = arith.addf %51, %37 : vector<32x128xf32>
    %cst_19 = arith.constant 0.000000e+00 : f32
    %53 = vector.broadcast %cst_19 : f32 to vector<32x128xf32>
    %54 = arith.maximumf %52, %53 : vector<32x128xf32>
    %c96 = arith.constant 96 : index
    %c0_20 = arith.constant 0 : index
    %55 = vector.load %arg2[%c96, %c0_20] : memref<160x128xbf16, #tpu.memory_space<vmem>>, vector<32x64xbf16>
    %c96_21 = arith.constant 96 : index
    %c0_22 = arith.constant 0 : index
    %56 = vector.load %arg3[%c96_21, %c0_22] : memref<160x1xf32, #tpu.memory_space<vmem>>, vector<32x1xf32>
    %c2_i32_23 = arith.constant 2 : i32
    %57 = tpu.dynamic_rotate %54 by %c2_i32_23 dim 1 : vector<32x128xf32>, i32 -> vector<32x128xf32>
    %cst_24 = arith.constant 0.000000e+00 : f32
    %58 = vector.shape_cast %20 : vector<1x128xi1> to vector<1x128xi1>
    %59 = vector.broadcast %58 : vector<1x128xi1> to vector<32x128xi1>
    %60 = vector.broadcast %cst_24 : f32 to vector<32x128xf32>
    %61 = arith.select %59, %57, %60 : vector<32x128xi1>, vector<32x128xf32>
    %62 = tpu.concatenate %61, %54 in 0 : vector<32x128xf32>, vector<32x128xf32> -> vector<64x128xf32>
    %63 = arith.truncf %62 : vector<64x128xf32> to vector<64x128xbf16>
    %cst_25 = arith.constant dense<0.000000e+00> : vector<32x128xf32>
    %64 = tpu.matmul %55, %63, %cst_25 {dimension_numbers = #tpu.dot_dimension_numbers<[1], [0], [0], [1], [0, 0, 1, 1], [], []>} : vector<32x64xbf16>, vector<64x128xbf16>, vector<32x128xf32> -> vector<32x128xf32>
    %65 = vector.broadcast %56 : vector<32x1xf32> to vector<32x128xf32>
    %66 = arith.addf %64, %65 : vector<32x128xf32>
    %cst_26 = arith.constant 0.000000e+00 : f32
    %67 = vector.broadcast %cst_26 : f32 to vector<32x128xf32>
    %68 = arith.maximumf %66, %67 : vector<32x128xf32>
    %c128 = arith.constant 128 : index
    %c0_27 = arith.constant 0 : index
    %69 = vector.load %arg2[%c128, %c0_27] : memref<160x128xbf16, #tpu.memory_space<vmem>>, vector<32x64xbf16>
    %c128_28 = arith.constant 128 : index
    %c0_29 = arith.constant 0 : index
    %70 = vector.load %arg3[%c128_28, %c0_29] : memref<160x1xf32, #tpu.memory_space<vmem>>, vector<32x1xf32>
    %c2_i32_30 = arith.constant 2 : i32
    %71 = tpu.dynamic_rotate %68 by %c2_i32_30 dim 1 : vector<32x128xf32>, i32 -> vector<32x128xf32>
    %cst_31 = arith.constant 0.000000e+00 : f32
    %72 = vector.shape_cast %20 : vector<1x128xi1> to vector<1x128xi1>
    %73 = vector.broadcast %72 : vector<1x128xi1> to vector<32x128xi1>
    %74 = vector.broadcast %cst_31 : f32 to vector<32x128xf32>
    %75 = arith.select %73, %71, %74 : vector<32x128xi1>, vector<32x128xf32>
    %76 = tpu.concatenate %75, %68 in 0 : vector<32x128xf32>, vector<32x128xf32> -> vector<64x128xf32>
    %77 = arith.truncf %76 : vector<64x128xf32> to vector<64x128xbf16>
    %cst_32 = arith.constant dense<0.000000e+00> : vector<32x128xf32>
    %78 = tpu.matmul %69, %77, %cst_32 {dimension_numbers = #tpu.dot_dimension_numbers<[1], [0], [0], [1], [0, 0, 1, 1], [], []>} : vector<32x64xbf16>, vector<64x128xbf16>, vector<32x128xf32> -> vector<32x128xf32>
    %79 = vector.broadcast %70 : vector<32x1xf32> to vector<32x128xf32>
    %80 = arith.addf %78, %79 : vector<32x128xf32>
    %cst_33 = arith.constant 0.000000e+00 : f32
    %81 = vector.broadcast %cst_33 : f32 to vector<32x128xf32>
    %82 = arith.maximumf %80, %81 : vector<32x128xf32>
    %83 = arith.addf %82, %54 : vector<32x128xf32>
    %cst_34 = arith.constant 0.000000e+00 : f32
    %84 = vector.broadcast %cst_34 : f32 to vector<32x128xf32>
    %85 = arith.maximumf %83, %84 : vector<32x128xf32>
    %86 = tpu.iota {dimensions = array<i32: 0>} : vector<2x128xi32>
    %87 = tpu.iota {dimensions = array<i32: 1>} : vector<2x128xi32>
    %c16_i32_35 = arith.constant 16 : i32
    %88 = vector.broadcast %c16_i32_35 : i32 to vector<2x128xi32>
    %89 = arith.muli %86, %88 : vector<2x128xi32>
    %c15_i32 = arith.constant 15 : i32
    %90 = vector.broadcast %c15_i32 : i32 to vector<2x128xi32>
    %91 = arith.addi %89, %90 : vector<2x128xi32>
    %92 = arith.cmpi eq, %87, %91 : vector<2x128xi32>
    %93 = arith.extui %92 : vector<2x128xi1> to vector<2x128xi32>
    %94 = arith.sitofp %93 : vector<2x128xi32> to vector<2x128xf32>
    %cst_36 = arith.constant dense<0.000000e+00> : vector<2x32xf32>
    %95 = tpu.matmul %94, %85, %cst_36 {dimension_numbers = #tpu.dot_dimension_numbers<[1], [1], [0], [0], [0, 0, 1, 0], [], []>} : vector<2x128xf32>, vector<32x128xf32>, vector<2x32xf32> -> vector<2x32xf32>
    %96 = arith.truncf %95 : vector<2x32xf32> to vector<2x32xbf16>
    %c0_37 = arith.constant 0 : index
    %c0_38 = arith.constant 0 : index
    %97 = vector.load %arg4[%c0_37, %c0_38] : memref<32x128xbf16, #tpu.memory_space<vmem>>, vector<32x128xbf16>
    %cst_39 = arith.constant dense<0.000000e+00> : vector<2x128xf32>
    %98 = tpu.matmul %96, %97, %cst_39 {dimension_numbers = #tpu.dot_dimension_numbers<[1], [0], [0], [1], [0, 0, 1, 1], [], []>} : vector<2x32xbf16>, vector<32x128xbf16>, vector<2x128xf32> -> vector<2x128xf32>
    %c0_40 = arith.constant 0 : index
    %c0_41 = arith.constant 0 : index
    %99 = vector.load %arg5[%c0_40, %c0_41] : memref<1x128xf32, #tpu.memory_space<vmem>>, vector<1x128xf32>
    %100 = vector.broadcast %99 : vector<1x128xf32> to vector<2x128xf32>
    %101 = arith.addf %98, %100 : vector<2x128xf32>
    %c0_42 = arith.constant 0 : index
    %c0_43 = arith.constant 0 : index
    %102 = vector.load %arg6[%c0_42, %c0_43] : memref<2x128xf32, #tpu.memory_space<vmem>>, vector<2x128xf32>
    tpu.vector_store %arg6[%c0_42, %c0_43], %101 {strides = array<i32>} : memref<2x128xf32, #tpu.memory_space<vmem>>, vector<2x128xf32>,
    return
  }
  func.func @transform_0(%arg0: i32) -> (i32, i32) {
    %c0_i32 = arith.constant 0 : i32
    %c0_i32_0 = arith.constant 0 : i32
    %c0_i32_1 = arith.constant 0 : i32
    return %c0_i32, %c0_i32_0 : i32, i32
  }
  func.func @transform_1(%arg0: i32) -> (i32, i32) {
    %c0_i32 = arith.constant 0 : i32
    %c0_i32_0 = arith.constant 0 : i32
    %c0_i32_1 = arith.constant 0 : i32
    return %c0_i32, %c0_i32_0 : i32, i32
  }
  func.func @transform_2(%arg0: i32) -> (i32, i32) {
    %c0_i32 = arith.constant 0 : i32
    %c0_i32_0 = arith.constant 0 : i32
    %c0_i32_1 = arith.constant 0 : i32
    return %c0_i32, %c0_i32_0 : i32, i32
  }
  func.func @transform_3(%arg0: i32) -> (i32, i32) {
    %c0_i32 = arith.constant 0 : i32
    %c0_i32_0 = arith.constant 0 : i32
    %c0_i32_1 = arith.constant 0 : i32
    return %c0_i32, %c0_i32_0 : i32, i32
  }
  func.func @transform_4(%arg0: i32) -> (i32, i32) {
    %c0_i32 = arith.constant 0 : i32
    %c0_i32_0 = arith.constant 0 : i32
    %c0_i32_1 = arith.constant 0 : i32
    return %c0_i32, %c0_i32_0 : i32, i32
  }
  func.func @transform_5(%arg0: i32) -> (i32, i32) {
    %c0_i32 = arith.constant 0 : i32
    %c0_i32_0 = arith.constant 0 : i32
    %c0_i32_1 = arith.constant 0 : i32
    return %c0_i32, %c0_i32_0 : i32, i32
  }
}

</mosaic_0001>

<llo_original>
// kernel: tpu_custom_call.1
$region0: #{tpu_custom_call.1}
  #allocation0 [shape = 'u32[]', space=smem, size = 0x4, offset = 0x4, fixed_abs, tag = 'smem constant byte address 0x4 - core index']
  #allocation1 [shape = 'u32[144,128]{1,0:T(1,128)}', space=vmem, size = 0x12000, scoped, tag = 'internal scratch']
  %s0 = inlined_call_operand.vmem [shape: f32[4,128], index: 0, kind: input, shape index: {}]
  %s1 = inlined_call_operand.vmem [shape: bf16[160,128], index: 1, kind: input, shape index: {}]
  %s2 = inlined_call_operand.vmem [shape: f32[160,1], index: 2, kind: input, shape index: {}]
  %s3 = inlined_call_operand.vmem [shape: bf16[32,128], index: 3, kind: input, shape index: {}]
  %s4 = inlined_call_operand.vmem [shape: f32[1,128], index: 4, kind: input, shape index: {}]
  %s5 = inlined_call_operand.hbm [shape: f32[2,128], index: 5, kind: output, shape index: {}]
  %s6 = sld [smem:[#allocation0]]
  $region30: #{tpu_custom_call.1} parent=0
    _
  %s8 = ssub.s32 1, %s6
  %s9 = scalar_select 0, %s8, %s6
  $region1: #{tpu_custom_call.1} parent=0
    #allocation2 [shape = 'u8[1024]{0}', space=vmem, size = 0x400, scoped, tag = 'output window, operand 0, single buffered']
    #allocation3 [shape = 's32[1]{0}', space=sflag, size = 0x4, scoped, tag = 'scoped memory for tpu_custom_call.1']
    %10 = vsyncpa [#allocation3], 0
    // Predicated region
    $region2: #{tpu_custom_call.1} parent=1 // pred_check
      _
    $region3: #{tpu_custom_call.1} parent=1 // pred_check_branch
      %12 = sbr.rel (0) target = $region5
    $region4: #{tpu_custom_call.1} parent=1 // pred_region
      _
    $region5: #{tpu_custom_call.1} parent=1 // pred_fallthru
      _
    // Predicated region
    $region6: #{tpu_custom_call.1} parent=1 // pred_check
      _
    $region7: #{tpu_custom_call.1} parent=1 // pred_check_branch
      %14 = sbr.rel (0) target = $region9
    $region8: #{tpu_custom_call.1} parent=1 // pred_region
      _
    $region9: #{tpu_custom_call.1} parent=1 // pred_fallthru
      _
    // Predicated region
    $region10: #{tpu_custom_call.1} parent=1 // pred_check
      _
    $region11: #{tpu_custom_call.1} parent=1 // pred_check_branch
      %16 = sbr.rel (0) target = $region13
    $region12: #{tpu_custom_call.1} parent=1 // pred_region
      _
    $region13: #{tpu_custom_call.1} parent=1 // pred_fallthru
      _
    // Predicated region
    $region14: #{tpu_custom_call.1} parent=1 // pred_check
      _
    $region15: #{tpu_custom_call.1} parent=1 // pred_check_branch
      %18 = sbr.rel (0) target = $region17
    $region16: #{tpu_custom_call.1} parent=1 // pred_region
      _
    $region17: #{tpu_custom_call.1} parent=1 // pred_fallthru
      _
    // Predicated region
    $region18: #{tpu_custom_call.1} parent=1 // pred_check
      _
    $region19: #{tpu_custom_call.1} parent=1 // pred_check_branch
      %20 = sbr.rel (0) target = $region21
    $region20: #{tpu_custom_call.1} parent=1 // pred_region
      _
    $region21: #{tpu_custom_call.1} parent=1 // pred_fallthru
      _
    %v22 = vlaneseq
    %v23 = vand.u32 %v22, 127
    %vm24 = vcmp.lt.s32.totalorder %v23, 0
    %v25 = vsub.s32 0, %v23
    %v26 = vsel %vm24, %v25, %v23
    %v27 = vshrl.u32 %v26, 4
    %v28 = vand.u32 %v26, 15
    %v29 = vsub.s32 0, %v28
    %v30 = vsel %vm24, %v29, %v28
    %vm31 = vcmp.ne.s32.totalorder %v30, 0
    %vm32 = vcmp.lt.s32.totalorder %v30, 0
    %vm33 = vmand %vm32, %vm31
    %v34 = vadd.s32 %v30, 16
    %v35 = vsel %vm33, %v34, %v30
    %vm36 = vcmp.ge.s32.totalorder %v35, 1
    %vm37 = vcmp.ge.s32.totalorder %v35, 2
    %v38 = vld [vmem:[%s0] sm:$0xf]
    %v39 = vld [vmem:[%s1] sm:$0xf]
    %v40 = vld [vmem:[%s1 + $0x4] sm:$0xf]
    %v41 = vld [vmem:[%s1 + $0x8] sm:$0xf]
    %v42 = vld [vmem:[%s1 + $0xc] sm:$0xf]
    %v43 = vld [vmem:[%s1 + $0x10] sm:$0xf]
    %v44 = vld [vmem:[%s1 + $0x14] sm:$0xf]
    %v45 = vld [vmem:[%s1 + $0x18] sm:$0xf]
    %v46 = vld [vmem:[%s1 + $0x1c] sm:$0xf]
    %v47 = vld [vmem:[%s2] sm:$0xff]
    %v48 = vld [vmem:[%s2 + $0x8] sm:$0xff]
    %v49 = vld [vmem:[%s2 + $0x10] sm:$0xff]
    %v50 = vld [vmem:[%s2 + $0x18] sm:$0xff]
    %v51 = vld [vmem:[%s2 + $0x20] sm:$0xff]
    %v52 = vld [vmem:[%s2 + $0x28] sm:$0xff]
    %v53 = vld [vmem:[%s2 + $0x30] sm:$0xff]
    %v54 = vld [vmem:[%s2 + $0x38] sm:$0xff]
    %55 = vrot.lane.b32.xlu0 %v38, 1
    %v56 = vpop.permute.xlu0 %55
    %v57 = vsel %vm36, 1, 0
    %vm58 = vcmp.eq.s32.totalorder %v57, 1
    %v59 = vsel %vm58, %v56, 0.0
    %v61 = vrot.slane %v38, 4
    %vm63 = vcmask 1043456
    %v64 = vsel %vm63, %v59, %v61
    %v65 = vpack.c.bf16 %v64, %v64
    %67 = vset.pattern.permute.xlu0 0
    %68 = vperm.xlu0 %67, %v47
    %v69 = vpop.permute.xlu0 %68
    %72 = vset.pattern.permute.xlu0 0
    %73 = vperm.xlu0 %72, %v48
    %v74 = vpop.permute.xlu0 %73
    %77 = vset.pattern.permute.xlu0 0
    %78 = vperm.xlu0 %77, %v49
    %v79 = vpop.permute.xlu0 %78
    %82 = vset.pattern.permute.xlu0 0
    %83 = vperm.xlu0 %82, %v50
    %v84 = vpop.permute.xlu0 %83
    %87 = vset.pattern.permute.xlu0 0
    %88 = vperm.xlu0 %87, %v51
    %v89 = vpop.permute.xlu0 %88
    %92 = vset.pattern.permute.xlu0 0
    %93 = vperm.xlu0 %92, %v52
    %v94 = vpop.permute.xlu0 %93
    %97 = vset.pattern.permute.xlu0 0
    %98 = vperm.xlu0 %97, %v53
    %v99 = vpop.permute.xlu0 %98
    %102 = vset.pattern.permute.xlu0 0
    %103 = vperm.xlu0 %102, %v54
    %v104 = vpop.permute.xlu0 %103
    %v114 = vunpack.c.l.b16 %v39
    %v115 = vunpack.c.l.b16 %v40
    %v116 = vunpack.c.l.b16 %v41
    %v117 = vunpack.c.l.b16 %v42
    %v118 = vunpack.c.l.b16 %v43
    %v119 = vunpack.c.l.b16 %v44
    %v120 = vunpack.c.l.b16 %v45
    %v121 = vunpack.c.l.b16 %v46
    %v122 = vpack.c.b16 %v115, %v114
    %v123 = vpack.c.b16 %v117, %v116
    %v124 = vpack.c.b16 %v119, %v118
    %v125 = vpack.c.b16 %v121, %v120
    %vm126 = vcmask 64512
    %v128 = vsel %vm126, %v122, 0
    %v131 = vsel %vm126, %v123, 0
    %v134 = vsel %vm126, %v124, 0
    %v137 = vsel %vm126, %v125, 0
    %v140 = vsel %vm63, %v65, 0
    %142 = vmatprep.subr.bf16.mxu0 0
    %143 = vmatpush1.bf16.msra.mxu0 %v140
    %144 = vmatprep.subr.bf16.mxu0 0
    %145 = vmatpush1.bf16.msra.mxu0 0
    %146 = vmatprep.subr.bf16.mxu0 0
    %147 = vmatpush1.bf16.msra.mxu0 0
    %148 = vmatprep.subr.bf16.mxu0 0
    %149 = vmatpush1.bf16.msra.mxu0 0
    %150 = vmatprep.subr.bf16.mxu0 0
    %151 = vmatpush1.bf16.msra.mxu0 0
    %152 = vmatprep.subr.bf16.mxu0 0
    %153 = vmatpush1.bf16.msra.mxu0 0
    %154 = vmatprep.subr.bf16.mxu0 0
    %155 = vmatpush1.bf16.msra.mxu0 0
    %156 = vmatprep.subr.bf16.mxu0 0
    %157 = vmatpush1.bf16.msra.mxu0 0
    %158 = vmatprep.subr.bf16.mxu0 0
    %159 = vmatpush1.bf16.msra.mxu0 0
    %160 = vmatprep.subr.bf16.mxu0 0
    %161 = vmatpush1.bf16.msra.mxu0 0
    %162 = vmatprep.subr.bf16.mxu0 0
    %163 = vmatpush1.bf16.msra.mxu0 0
    %164 = vmatprep.subr.bf16.mxu0 0
    %165 = vmatpush1.bf16.msra.mxu0 0
    %166 = vmatprep.subr.bf16.mxu0 0
    %167 = vmatpush1.bf16.msra.mxu0 0
    %168 = vmatprep.subr.bf16.mxu0 0
    %169 = vmatpush1.bf16.msra.mxu0 0
    %170 = vmatprep.subr.bf16.mxu0 0
    %171 = vmatpush1.bf16.msra.mxu0 0
    %172 = vmatprep.subr.bf16.mxu0 0
    %173 = vmatpush1.bf16.msra.mxu0 0
    %174 = vmatprep.mubr.bf16.mxu0 0
    %175 = vmatmul.mubr.bf16.gmra.mrb[0].mxu0 %v128
    %v176 = vpop.f32.mrb[0].mxu0
    %v177 = vadd.f32 %v69, %v176
    %v178 = vpop.f32.mrb[0].mxu0
    %v179 = vpop.f32.mrb[0].mxu0
    %v180 = vadd.f32 %v74, %v179
    %v181 = vpop.f32.mrb[0].mxu0
    %182 = vmatprep.mubr.bf16.mxu0 0
    %183 = vmatmul.mubr.bf16.gmra.mrb[0].mxu0 %v131
    %v184 = vpop.f32.mrb[0].mxu0
    %v185 = vadd.f32 %v79, %v184
    %v186 = vpop.f32.mrb[0].mxu0
    %v187 = vpop.f32.mrb[0].mxu0
    %v188 = vadd.f32 %v84, %v187
    %v189 = vpop.f32.mrb[0].mxu0
    %190 = vmatprep.mubr.bf16.mxu0 0
    %191 = vmatmul.mubr.bf16.gmra.mrb[0].mxu0 %v134
    %v192 = vpop.f32.mrb[0].mxu0
    %v193 = vadd.f32 %v89, %v192
    %v194 = vpop.f32.mrb[0].mxu0
    %v195 = vpop.f32.mrb[0].mxu0
    %v196 = vadd.f32 %v94, %v195
    %v197 = vpop.f32.mrb[0].mxu0
    %198 = vmatprep.mubr.bf16.mxu0 0
    %199 = vmatmul.mubr.bf16.gmra.mrb[0].mxu0 %v137
    %v200 = vpop.f32.mrb[0].mxu0
    %v201 = vadd.f32 %v99, %v200
    %v202 = vpop.f32.mrb[0].mxu0
    %v203 = vpop.f32.mrb[0].mxu0
    %v204 = vadd.f32 %v104, %v203
    %v205 = vpop.f32.mrb[0].mxu0
    %206 = vdwg.mxu0
    %v207 = vmax.f32 %v177, 0.0
    %v208 = vmax.f32 %v180, 0.0
    %v209 = vmax.f32 %v185, 0.0
    %v210 = vmax.f32 %v188, 0.0
    %v211 = vld [vmem:[%s1 + $0x20] sm:$0xf]
    %v212 = vld [vmem:[%s1 + $0x24] sm:$0xf]
    %v213 = vld [vmem:[%s1 + $0x28] sm:$0xf]
    %v214 = vld [vmem:[%s1 + $0x2c] sm:$0xf]
    %v215 = vld [vmem:[%s2 + $0x40] sm:$0xff]
    %v216 = vld [vmem:[%s2 + $0x48] sm:$0xff]
    %v217 = vld [vmem:[%s2 + $0x50] sm:$0xff]
    %v218 = vld [vmem:[%s2 + $0x58] sm:$0xff]
    %219 = vrot.lane.b32.xlu0 %v207, 1
    %v220 = vpop.permute.xlu0 %219
    %221 = vrot.lane.b32.xlu0 %v208, 1
    %v222 = vpop.permute.xlu0 %221
    %223 = vrot.lane.b32.xlu0 %v209, 1
    %v224 = vpop.permute.xlu0 %223
    %225 = vrot.lane.b32.xlu0 %v210, 1
    %v226 = vpop.permute.xlu0 %225
    %v227 = vsel %vm58, %v220, 0.0
    %v228 = vsel %vm58, %v222, 0.0
    %v229 = vsel %vm58, %v224, 0.0
    %v230 = vsel %vm58, %v226, 0.0
    %v231 = vpack.c.bf16 %v228, %v227
    %v232 = vpack.c.bf16 %v230, %v229
    %v233 = vpack.c.bf16 %v208, %v207
    %v234 = vpack.c.bf16 %v210, %v209
    %236 = vset.pattern.permute.xlu0 0
    %237 = vperm.xlu0 %236, %v215
    %v238 = vpop.permute.xlu0 %237
    %241 = vset.pattern.permute.xlu0 0
    %242 = vperm.xlu0 %241, %v216
    %v243 = vpop.permute.xlu0 %242
    %246 = vset.pattern.permute.xlu0 0
    %247 = vperm.xlu0 %246, %v217
    %v248 = vpop.permute.xlu0 %247
    %251 = vset.pattern.permute.xlu0 0
    %252 = vperm.xlu0 %251, %v218
    %v253 = vpop.permute.xlu0 %252
    %v259 = vunpack.c.l.b16 %v211
    %v260 = vunpack.c.l.b16 %v212
    %v261 = vunpack.c.l.b16 %v213
    %v262 = vunpack.c.l.b16 %v214
    %v263 = vpack.c.b16 %v260, %v259
    %v264 = vpack.c.b16 %v262, %v261
    %vm265 = vcmask 523264
    %v267 = vsel %vm265, %v263, 0
    %v270 = vsel %vm265, %v264, 0
    %272 = vmatprep.subr.bf16.mxu0 0
    %273 = vmatpush1.bf16.msra.mxu0 %v231
    %274 = vmatprep.subr.bf16.mxu0 0
    %275 = vmatpush1.bf16.msra.mxu0 %v232
    %276 = vmatprep.subr.bf16.mxu0 0
    %277 = vmatpush1.bf16.msra.mxu0 %v233
    %278 = vmatprep.subr.bf16.mxu0 0
    %279 = vmatpush1.bf16.msra.mxu0 %v234
    %280 = vmatprep.subr.bf16.mxu0 0
    %281 = vmatpush1.bf16.msra.mxu0 0
    %282 = vmatprep.subr.bf16.mxu0 0
    %283 = vmatpush1.bf16.msra.mxu0 0
    %284 = vmatprep.subr.bf16.mxu0 0
    %285 = vmatpush1.bf16.msra.mxu0 0
    %286 = vmatprep.subr.bf16.mxu0 0
    %287 = vmatpush1.bf16.msra.mxu0 0
    %288 = vmatprep.subr.bf16.mxu0 0
    %289 = vmatpush1.bf16.msra.mxu0 0
    %290 = vmatprep.subr.bf16.mxu0 0
    %291 = vmatpush1.bf16.msra.mxu0 0
    %292 = vmatprep.subr.bf16.mxu0 0
    %293 = vmatpush1.bf16.msra.mxu0 0
    %294 = vmatprep.subr.bf16.mxu0 0
    %295 = vmatpush1.bf16.msra.mxu0 0
    %296 = vmatprep.subr.bf16.mxu0 0
    %297 = vmatpush1.bf16.msra.mxu0 0
    %298 = vmatprep.subr.bf16.mxu0 0
    %299 = vmatpush1.bf16.msra.mxu0 0
    %300 = vmatprep.subr.bf16.mxu0 0
    %301 = vmatpush1.bf16.msra.mxu0 0
    %302 = vmatprep.subr.bf16.mxu0 0
    %303 = vmatpush1.bf16.msra.mxu0 0
    %304 = vmatprep.mubr.bf16.mxu0 0
    %305 = vmatmul.mubr.bf16.gmra.mrb[0].mxu0 %v267
    %v306 = vpop.f32.mrb[0].mxu0
    %v307 = vadd.f32 %v238, %v306
    %v308 = vpop.f32.mrb[0].mxu0
    %v309 = vpop.f32.mrb[0].mxu0
    %v310 = vadd.f32 %v243, %v309
    %v311 = vpop.f32.mrb[0].mxu0
    %312 = vmatprep.mubr.bf16.mxu0 0
    %313 = vmatmul.mubr.bf16.gmra.mrb[0].mxu0 %v270
    %v314 = vpop.f32.mrb[0].mxu0
    %v315 = vadd.f32 %v248, %v314
    %v316 = vpop.f32.mrb[0].mxu0
    %v317 = vpop.f32.mrb[0].mxu0
    %v318 = vadd.f32 %v253, %v317
    %v319 = vpop.f32.mrb[0].mxu0
    %320 = vdwg.mxu0
    %v321 = vmax.f32 %v307, 0.0
    %v322 = vmax.f32 %v310, 0.0
    %v323 = vmax.f32 %v315, 0.0
    %v324 = vmax.f32 %v318, 0.0
    %v325 = vadd.f32 %v321, %v193
    %v326 = vadd.f32 %v322, %v196
    %v327 = vadd.f32 %v323, %v201
    %v328 = vadd.f32 %v324, %v204
    %v329 = vmax.f32 %v325, 0.0
    %v330 = vmax.f32 %v326, 0.0
    %v331 = vmax.f32 %v327, 0.0
    %v332 = vmax.f32 %v328, 0.0
    %v333 = vld [vmem:[%s1 + $0x30] sm:$0xf]
    %v334 = vld [vmem:[%s1 + $0x34] sm:$0xf]
    %v335 = vld [vmem:[%s1 + $0x38] sm:$0xf]
    %v336 = vld [vmem:[%s1 + $0x3c] sm:$0xf]
    %v337 = vld [vmem:[%s2 + $0x60] sm:$0xff]
    %v338 = vld [vmem:[%s2 + $0x68] sm:$0xff]
    %v339 = vld [vmem:[%s2 + $0x70] sm:$0xff]
    %v340 = vld [vmem:[%s2 + $0x78] sm:$0xff]
    %341 = vrot.lane.b32.xlu0 %v329, 2
    %v342 = vpop.permute.xlu0 %341
    %343 = vrot.lane.b32.xlu0 %v330, 2
    %v344 = vpop.permute.xlu0 %343
    %345 = vrot.lane.b32.xlu0 %v331, 2
    %v346 = vpop.permute.xlu0 %345
    %347 = vrot.lane.b32.xlu0 %v332, 2
    %v348 = vpop.permute.xlu0 %347
    %v349 = vsel %vm37, 1, 0
    %vm350 = vcmp.eq.s32.totalorder %v349, 1
    %v351 = vsel %vm350, %v342, 0.0
    %v352 = vsel %vm350, %v344, 0.0
    %v353 = vsel %vm350, %v346, 0.0
    %v354 = vsel %vm350, %v348, 0.0
    %v355 = vpack.c.bf16 %v352, %v351
    %v356 = vpack.c.bf16 %v354, %v353
    %v357 = vpack.c.bf16 %v330, %v329
    %v358 = vpack.c.bf16 %v332, %v331
    %360 = vset.pattern.permute.xlu0 0
    %361 = vperm.xlu0 %360, %v337
    %v362 = vpop.permute.xlu0 %361
    %365 = vset.pattern.permute.xlu0 0
    %366 = vperm.xlu0 %365, %v338
    %v367 = vpop.permute.xlu0 %366
    %370 = vset.pattern.permute.xlu0 0
    %371 = vperm.xlu0 %370, %v339
    %v372 = vpop.permute.xlu0 %371
    %375 = vset.pattern.permute.xlu0 0
    %376 = vperm.xlu0 %375, %v340
    %v377 = vpop.permute.xlu0 %376
    %v383 = vunpack.c.l.b16 %v333
    %v384 = vunpack.c.l.b16 %v334
    %v385 = vunpack.c.l.b16 %v335
    %v386 = vunpack.c.l.b16 %v336
    %v387 = vpack.c.b16 %v384, %v383
    %v388 = vpack.c.b16 %v386, %v385
    %v390 = vsel %vm265, %v387, 0
    %v393 = vsel %vm265, %v388, 0
    %395 = vmatprep.subr.bf16.mxu0 0
    %396 = vmatpush1.bf16.msra.mxu0 %v355
    %397 = vmatprep.subr.bf16.mxu0 0
    %398 = vmatpush1.bf16.msra.mxu0 %v356
    %399 = vmatprep.subr.bf16.mxu0 0
    %400 = vmatpush1.bf16.msra.mxu0 %v357
    %401 = vmatprep.subr.bf16.mxu0 0
    %402 = vmatpush1.bf16.msra.mxu0 %v358
    %403 = vmatprep.subr.bf16.mxu0 0
    %404 = vmatpush1.bf16.msra.mxu0 0
    %405 = vmatprep.subr.bf16.mxu0 0
    %406 = vmatpush1.bf16.msra.mxu0 0
    %407 = vmatprep.subr.bf16.mxu0 0
    %408 = vmatpush1.bf16.msra.mxu0 0
    %409 = vmatprep.subr.bf16.mxu0 0
    %410 = vmatpush1.bf16.msra.mxu0 0
    %411 = vmatprep.subr.bf16.mxu0 0
    %412 = vmatpush1.bf16.msra.mxu0 0
    %413 = vmatprep.subr.bf16.mxu0 0
    %414 = vmatpush1.bf16.msra.mxu0 0
    %415 = vmatprep.subr.bf16.mxu0 0
    %416 = vmatpush1.bf16.msra.mxu0 0
    %417 = vmatprep.subr.bf16.mxu0 0
    %418 = vmatpush1.bf16.msra.mxu0 0
    %419 = vmatprep.subr.bf16.mxu0 0
    %420 = vmatpush1.bf16.msra.mxu0 0
    %421 = vmatprep.subr.bf16.mxu0 0
    %422 = vmatpush1.bf16.msra.mxu0 0
    %423 = vmatprep.subr.bf16.mxu0 0
    %424 = vmatpush1.bf16.msra.mxu0 0
    %425 = vmatprep.subr.bf16.mxu0 0
    %426 = vmatpush1.bf16.msra.mxu0 0
    %427 = vmatprep.mubr.bf16.mxu0 0
    %428 = vmatmul.mubr.bf16.gmra.mrb[0].mxu0 %v390
    %v429 = vpop.f32.mrb[0].mxu0
    %v430 = vadd.f32 %v362, %v429
    %v431 = vpop.f32.mrb[0].mxu0
    %v432 = vpop.f32.mrb[0].mxu0
    %v433 = vadd.f32 %v367, %v432
    %v434 = vpop.f32.mrb[0].mxu0
    %435 = vmatprep.mubr.bf16.mxu0 0
    %436 = vmatmul.mubr.bf16.gmra.mrb[0].mxu0 %v393
    %v437 = vpop.f32.mrb[0].mxu0
    %v438 = vadd.f32 %v372, %v437
    %v439 = vpop.f32.mrb[0].mxu0
    %v440 = vpop.f32.mrb[0].mxu0
    %v441 = vadd.f32 %v377, %v440
    %v442 = vpop.f32.mrb[0].mxu0
    %443 = vdwg.mxu0
    %v444 = vmax.f32 %v430, 0.0
    %v445 = vmax.f32 %v433, 0.0
    %v446 = vmax.f32 %v438, 0.0
    %v447 = vmax.f32 %v441, 0.0
    %v448 = vld [vmem:[%s1 + $0x40] sm:$0xf]
    %v449 = vld [vmem:[%s1 + $0x44] sm:$0xf]
    %v450 = vld [vmem:[%s1 + $0x48] sm:$0xf]
    %v451 = vld [vmem:[%s1 + $0x4c] sm:$0xf]
    %v452 = vld [vmem:[%s2 + $0x80] sm:$0xff]
    %v453 = vld [vmem:[%s2 + $0x88] sm:$0xff]
    %v454 = vld [vmem:[%s2 + $0x90] sm:$0xff]
    %v455 = vld [vmem:[%s2 + $0x98] sm:$0xff]
    %456 = vrot.lane.b32.xlu0 %v444, 2
    %v457 = vpop.permute.xlu0 %456
    %458 = vrot.lane.b32.xlu0 %v445, 2
    %v459 = vpop.permute.xlu0 %458
    %460 = vrot.lane.b32.xlu0 %v446, 2
    %v461 = vpop.permute.xlu0 %460
    %462 = vrot.lane.b32.xlu0 %v447, 2
    %v463 = vpop.permute.xlu0 %462
    %v464 = vsel %vm350, %v457, 0.0
    %v465 = vsel %vm350, %v459, 0.0
    %v466 = vsel %vm350, %v461, 0.0
    %v467 = vsel %vm350, %v463, 0.0
    %v468 = vpack.c.bf16 %v465, %v464
    %v469 = vpack.c.bf16 %v467, %v466
    %v470 = vpack.c.bf16 %v445, %v444
    %v471 = vpack.c.bf16 %v447, %v446
    %473 = vset.pattern.permute.xlu0 0
    %474 = vperm.xlu0 %473, %v452
    %v475 = vpop.permute.xlu0 %474
    %478 = vset.pattern.permute.xlu0 0
    %479 = vperm.xlu0 %478, %v453
    %v480 = vpop.permute.xlu0 %479
    %483 = vset.pattern.permute.xlu0 0
    %484 = vperm.xlu0 %483, %v454
    %v485 = vpop.permute.xlu0 %484
    %488 = vset.pattern.permute.xlu0 0
    %489 = vperm.xlu0 %488, %v455
    %v490 = vpop.permute.xlu0 %489
    %v496 = vunpack.c.l.b16 %v448
    %v497 = vunpack.c.l.b16 %v449
    %v498 = vunpack.c.l.b16 %v450
    %v499 = vunpack.c.l.b16 %v451
    %v500 = vpack.c.b16 %v497, %v496
    %v501 = vpack.c.b16 %v499, %v498
    %v503 = vsel %vm265, %v500, 0
    %v506 = vsel %vm265, %v501, 0
    %508 = vmatprep.subr.bf16.mxu0 0
    %509 = vmatpush1.bf16.msra.mxu0 %v468
    %510 = vmatprep.subr.bf16.mxu0 0
    %511 = vmatpush1.bf16.msra.mxu0 %v469
    %512 = vmatprep.subr.bf16.mxu0 0
    %513 = vmatpush1.bf16.msra.mxu0 %v470
    %514 = vmatprep.subr.bf16.mxu0 0
    %515 = vmatpush1.bf16.msra.mxu0 %v471
    %516 = vmatprep.subr.bf16.mxu0 0
    %517 = vmatpush1.bf16.msra.mxu0 0
    %518 = vmatprep.subr.bf16.mxu0 0
    %519 = vmatpush1.bf16.msra.mxu0 0
    %520 = vmatprep.subr.bf16.mxu0 0
    %521 = vmatpush1.bf16.msra.mxu0 0
    %522 = vmatprep.subr.bf16.mxu0 0
    %523 = vmatpush1.bf16.msra.mxu0 0
    %524 = vmatprep.subr.bf16.mxu0 0
    %525 = vmatpush1.bf16.msra.mxu0 0
    %526 = vmatprep.subr.bf16.mxu0 0
    %527 = vmatpush1.bf16.msra.mxu0 0
    %528 = vmatprep.subr.bf16.mxu0 0
    %529 = vmatpush1.bf16.msra.mxu0 0
    %530 = vmatprep.subr.bf16.mxu0 0
    %531 = vmatpush1.bf16.msra.mxu0 0
    %532 = vmatprep.subr.bf16.mxu0 0
    %533 = vmatpush1.bf16.msra.mxu0 0
    %534 = vmatprep.subr.bf16.mxu0 0
    %535 = vmatpush1.bf16.msra.mxu0 0
    %536 = vmatprep.subr.bf16.mxu0 0
    %537 = vmatpush1.bf16.msra.mxu0 0
    %538 = vmatprep.subr.bf16.mxu0 0
    %539 = vmatpush1.bf16.msra.mxu0 0
    %540 = vmatprep.mubr.bf16.mxu0 0
    %541 = vmatmul.mubr.bf16.gmra.mrb[0].mxu0 %v503
    %v542 = vpop.f32.mrb[0].mxu0
    %v543 = vadd.f32 %v475, %v542
    %v544 = vpop.f32.mrb[0].mxu0
    %v545 = vpop.f32.mrb[0].mxu0
    %v546 = vadd.f32 %v480, %v545
    %v547 = vpop.f32.mrb[0].mxu0
    %548 = vmatprep.mubr.bf16.mxu0 0
    %549 = vmatmul.mubr.bf16.gmra.mrb[0].mxu0 %v506
    %v550 = vpop.f32.mrb[0].mxu0
    %v551 = vadd.f32 %v485, %v550
    %v552 = vpop.f32.mrb[0].mxu0
    %v553 = vpop.f32.mrb[0].mxu0
    %v554 = vadd.f32 %v490, %v553
    %v555 = vpop.f32.mrb[0].mxu0
    %556 = vdwg.mxu0
    %v557 = vmax.f32 %v543, 0.0
    %v558 = vmax.f32 %v546, 0.0
    %v559 = vmax.f32 %v551, 0.0
    %v560 = vmax.f32 %v554, 0.0
    %v561 = vadd.f32 %v557, %v329
    %v562 = vadd.f32 %v558, %v330
    %v563 = vadd.f32 %v559, %v331
    %v564 = vadd.f32 %v560, %v332
    %v565 = vmax.f32 %v561, 0.0
    %v566 = vmax.f32 %v562, 0.0
    %v567 = vmax.f32 %v563, 0.0
    %v568 = vmax.f32 %v564, 0.0
    %v569 = vlaneseq
    %v570 = vshrl.u32 %v569, 7
    %v571 = vmul.u32 %v570, 16
    %v572 = vadd.s32 %v571, 15
    %vm573 = vcmp.eq.s32.totalorder %v23, %v572
    %v574 = vsel %vm573, 1, 0
    %v575 = vcvt.s32.f32 %v574
    %576 = vmatprep.subr.mxu0 0.0
    %577 = vmatpush1.xpose.msra.mxu0 %v565
    %578 = vmatprep.subr.mxu0 0.0
    %579 = vmatpush1.xpose.msra.mxu0 %v566
    %580 = vmatprep.subr.mxu0 0.0
    %581 = vmatpush1.xpose.msra.mxu0 %v567
    %582 = vmatprep.subr.mxu0 0.0
    %583 = vmatpush1.xpose.msra.mxu0 %v568
    %584 = vmatprep.subr.mxu0 0.0
    %585 = vmatpush1.xpose.msra.mxu0 0.0
    %586 = vmatprep.subr.mxu0 0.0
    %587 = vmatpush1.xpose.msra.mxu0 0.0
    %588 = vmatprep.subr.mxu0 0.0
    %589 = vmatpush1.xpose.msra.mxu0 0.0
    %590 = vmatprep.subr.mxu0 0.0
    %591 = vmatpush1.xpose.msra.mxu0 0.0
    %592 = vmatprep.subr.mxu0 0.0
    %593 = vmatpush1.xpose.msra.mxu0 0.0
    %594 = vmatprep.subr.mxu0 0.0
    %595 = vmatpush1.xpose.msra.mxu0 0.0
    %596 = vmatprep.subr.mxu0 0.0
    %597 = vmatpush1.xpose.msra.mxu0 0.0
    %598 = vmatprep.subr.mxu0 0.0
    %599 = vmatpush1.xpose.msra.mxu0 0.0
    %600 = vmatprep.subr.mxu0 0.0
    %601 = vmatpush1.xpose.msra.mxu0 0.0
    %602 = vmatprep.subr.mxu0 0.0
    %603 = vmatpush1.xpose.msra.mxu0 0.0
    %604 = vmatprep.subr.mxu0 0.0
    %605 = vmatpush1.xpose.msra.mxu0 0.0
    %606 = vmatprep.subr.mxu0 0.0
    %607 = vmatpush1.xpose.msra.mxu0 0.0
    %608 = vmatprep.subr.mxu0 0.0
    %609 = vmatpush1.xpose.msra.mxu0 0.0
    %610 = vmatprep.subr.mxu0 0.0
    %611 = vmatpush1.xpose.msra.mxu0 0.0
    %612 = vmatprep.subr.mxu0 0.0
    %613 = vmatpush1.xpose.msra.mxu0 0.0
    %614 = vmatprep.subr.mxu0 0.0
    %615 = vmatpush1.xpose.msra.mxu0 0.0
    %616 = vmatprep.subr.mxu0 0.0
    %617 = vmatpush1.xpose.msra.mxu0 0.0
    %618 = vmatprep.subr.mxu0 0.0
    %619 = vmatpush1.xpose.msra.mxu0 0.0
    %620 = vmatprep.subr.mxu0 0.0
    %621 = vmatpush1.xpose.msra.mxu0 0.0
    %622 = vmatprep.subr.mxu0 0.0
    %623 = vmatpush1.xpose.msra.mxu0 0.0
    %624 = vmatprep.subr.mxu0 0.0
    %625 = vmatpush1.xpose.msra.mxu0 0.0
    %626 = vmatprep.subr.mxu0 0.0
    %627 = vmatpush1.xpose.msra.mxu0 0.0
    %628 = vmatprep.subr.mxu0 0.0
    %629 = vmatpush1.xpose.msra.mxu0 0.0
    %630 = vmatprep.subr.mxu0 0.0
    %631 = vmatpush1.xpose.msra.mxu0 0.0
    %632 = vmatprep.subr.mxu0 0.0
    %633 = vmatpush1.xpose.msra.mxu0 0.0
    %634 = vmatprep.subr.mxu0 0.0
    %635 = vmatpush1.xpose.msra.mxu0 0.0
    %636 = vmatprep.subr.mxu0 0.0
    %637 = vmatpush1.xpose.msra.mxu0 0.0
    %638 = vmatprep.subr.mxu0 0.0
    %639 = vmatpush1.xpose.msra.mxu0 0.0
    %640 = vmatprep.mubr.f32.mxu0 0.0
    %641 = vmatmul.mubr.f32.gmra.mrb[0].mxu0 %v575
    %v642 = vpop.f32.mrb[0].mxu0
    %v643 = vadd.f32 0.0, %v642
    %v644 = vpop.f32.mrb[0].mxu0
    %645 = vdwg.mxu0
    %v646 = vpack.c.bf16 %v643, %v643
    %v647 = vld [vmem:[%s3] sm:$0xf]
    %v648 = vld [vmem:[%s3 + $0x4] sm:$0xf]
    %v649 = vld [vmem:[%s3 + $0x8] sm:$0xf]
    %v650 = vld [vmem:[%s3 + $0xc] sm:$0xf]
    %v651 = vld [vmem:[%s4] sm:$0x1]
    %v653 = vlaneseq
    %v654 = vshrl.u32 %v653, 7
    %v655 = vsub.s32 0, %v654
    %v656 = vrot.slane %v651, %v655
    %v662 = vunpack.c.l.b16 %v647
    %v663 = vunpack.c.l.b16 %v648
    %v664 = vunpack.c.l.b16 %v649
    %v665 = vunpack.c.l.b16 %v650
    %v666 = vpack.c.b16 %v663, %v662
    %v667 = vpack.c.b16 %v665, %v664
    %vm670 = vcmask 261120
    %v672 = vsel %vm670, %v646, 0
    %674 = vmatprep.subr.bf16.mxu0 0
    %675 = vmatpush1.bf16.msra.mxu0 %v666
    %676 = vmatprep.subr.bf16.mxu0 0
    %677 = vmatpush1.bf16.msra.mxu0 %v667
    %678 = vmatprep.subr.bf16.mxu0 0
    %679 = vmatpush1.bf16.msra.mxu0 0
    %680 = vmatprep.subr.bf16.mxu0 0
    %681 = vmatpush1.bf16.msra.mxu0 0
    %682 = vmatprep.subr.bf16.mxu0 0
    %683 = vmatpush1.bf16.msra.mxu0 0
    %684 = vmatprep.subr.bf16.mxu0 0
    %685 = vmatpush1.bf16.msra.mxu0 0
    %686 = vmatprep.subr.bf16.mxu0 0
    %687 = vmatpush1.bf16.msra.mxu0 0
    %688 = vmatprep.subr.bf16.mxu0 0
    %689 = vmatpush1.bf16.msra.mxu0 0
    %690 = vmatprep.subr.bf16.mxu0 0
    %691 = vmatpush1.bf16.msra.mxu0 0
    %692 = vmatprep.subr.bf16.mxu0 0
    %693 = vmatpush1.bf16.msra.mxu0 0
    %694 = vmatprep.subr.bf16.mxu0 0
    %695 = vmatpush1.bf16.msra.mxu0 0
    %696 = vmatprep.subr.bf16.mxu0 0
    %697 = vmatpush1.bf16.msra.mxu0 0
    %698 = vmatprep.subr.bf16.mxu0 0
    %699 = vmatpush1.bf16.msra.mxu0 0
    %700 = vmatprep.subr.bf16.mxu0 0
    %701 = vmatpush1.bf16.msra.mxu0 0
    %702 = vmatprep.subr.bf16.mxu0 0
    %703 = vmatpush1.bf16.msra.mxu0 0
    %704 = vmatprep.subr.bf16.mxu0 0
    %705 = vmatpush1.bf16.msra.mxu0 0
    %706 = vmatprep.mubr.bf16.mxu0 0
    %707 = vmatmul.mubr.bf16.gmra.mrb[0].mxu0 %v672
    %v708 = vpop.f32.mrb[0].mxu0
    %v709 = vadd.f32 %v656, %v708
    %v710 = vpop.f32.mrb[0].mxu0
    %v711 = vpop.f32.mrb[0].mxu0
    %v712 = vpop.f32.mrb[0].mxu0
    %713 = vdwg.mxu0
    %714 = vst [vmem:[#allocation2] sm:$0x3] %v709
    // Predicated region
    $region22: #{tpu_custom_call.1} parent=1 // pred_check
      _
    $region23: #{tpu_custom_call.1} parent=1 // pred_check_branch
      %716 = sbr.rel (0) target = $region25
    $region24: #{tpu_custom_call.1} parent=1 // pred_region
      %s718 = ssub.s32 32, 32
      %719 = vsyncadd [#allocation3], %s718
      %s721 = sshll.u32 [#allocation2], 4
      %s722 = int_to_ptr.vmem [resolvable:$true] %s721
      %724 = dma.vmem_to_hbm [thread:$0]  %s722, 32, %s5, [#allocation3]
    $region25: #{tpu_custom_call.1} parent=1 // pred_fallthru
      _
    // Predicated region
    $region26: #{tpu_custom_call.1} parent=1 // pred_check
      _
    $region27: #{tpu_custom_call.1} parent=1 // pred_check_branch
      %726 = sbr.rel (0) target = $region29
    $region28: #{tpu_custom_call.1} parent=1 // pred_region
      %727 = dma.done [#allocation3], 32
    $region29: #{tpu_custom_call.1} parent=1 // pred_fallthru
      _
    %728 = vsyncpa [#allocation3], 1

</llo_original>
